<compile_context>
chip_gen: v6e
topology: v6e:2x2x1
jax: 0.10.0
libtpu: 0.0.40
codegen_flags: <defaults>
</compile_context>

<pallas_src>
import jax
import jax.numpy as jnp
from jax.experimental import pallas as pl
from jax.experimental.pallas import tpu as pltpu


def _round_up(x, m):
    return ((x + m - 1) // m) * m


def _vmem_capacity_bytes():
    try:
        info = pltpu.get_tpu_info()
        cap = getattr(info, "vmem_capacity_bytes", None)
        if cap:
            return int(cap)
    except Exception:
        pass
    return 64 * 1024 * 1024  # conservative fallback (v7x-sized)


def _predictor_kernel(x_ref, w_ref, m_ref, o_ref, acc_ref):
    # x_ref: [TM, TK] native dtype, w_ref: [TK, TN] compute dtype,
    # m_ref: [TM, 1] f32, o_ref: [TM, TN], acc_ref: [TM, TN] f32 scratch.
    k = pl.program_id(2)

    @pl.when(k == 0)
    def _init():
        acc_ref[...] = jnp.zeros_like(acc_ref)

    # Cast x inside the kernel (VPU, hidden under DMA) instead of in the wrapper so the
    # dominant HBM stream stays in the input's native dtype.
    acc_ref[...] += jnp.dot(
        x_ref[...].astype(w_ref.dtype), w_ref[...],
        preferred_element_type=jnp.float32)

    @pl.when(k == pl.num_programs(2) - 1)
    def _finalize():
        # Mask multiply rides the VPU; this op is DMA/MXU bound so it is free.
        o_ref[...] = (acc_ref[...] * m_ref[...]).astype(o_ref.dtype)


def prepare_predictor_weight(weight, compute_dtype=jnp.float32):
    """One-time parameter prep (hoist out of the forward path).

    weight: [num_types, dim] (PyTorch nn.Linear layout) -> returns [dim, num_types]
    in `compute_dtype`. Default f32 matches PyTorch math exactly; pass bf16 to halve
    the weight HBM read when the consumer tolerates it.
    """
    return jnp.asarray(weight).T.astype(compute_dtype)


def _choose_tiles(M, D, N, x_itemsize, w_itemsize):
    cap = _vmem_capacity_bytes()
    budget = min(cap // 3, 40 * 1024 * 1024)

    # K tiling: only for large D that divides cleanly. A partial K block would feed padded
    # garbage into the reduction, so we never allow a remainder on K.
    TK = D
    if D > 2048:
        for cand in (2048, 1024, 512, 256):
            if D % cand == 0:
                TK = cand
                break

    # N tiling: keep the (double-buffered) weight block under ~half the budget. When it fits,
    # keep the full num_types as the block width (no padding, no post-kernel slice).
    TN = N
    w_bytes = 2 * TK * TN * w_itemsize
    if w_bytes > budget // 2:
        tn = (budget // 2) // (2 * TK * w_itemsize)
        TN = max(128, (tn // 128) * 128)
        w_bytes = 2 * TK * TN * w_itemsize

    # M tiling from the remainder: double-buffered x/out/mask tiles + f32 acc scratch.
    rem = max(budget - w_bytes, 512 * 1024)
    per_row = 2 * (TK * x_itemsize + TN * 4 + 4) + TN * 4
    TM = rem // max(per_row, 1)
    TM = max(8, min(TM, 1024))  # diminishing returns past ~512-1024 rows
    # Megacore: keep >= ~4 M tiles when M is large enough so both TensorCores get work (v7x).
    if M >= 32:
        TM = min(TM, max(8, _round_up(pl.cdiv(M, 4), 8)))
    TM = max(8, (TM // 8) * 8)
    TM = min(TM, _round_up(M, 8))
    return TM, TN, TK


def predictor_forward(data, w_prepared, non_pad_mask, *, use_pallas=None,
                      out_dtype=jnp.float32):
    """data: [B, L, D]; w_prepared: [D, N] from prepare_predictor_weight;
    non_pad_mask: [B, L, 1]. Returns [B, L, N] in out_dtype (default f32)."""
    B, L, D = data.shape
    Dw, N = w_prepared.shape
    assert Dw == D, "weight/dim mismatch"
    M = B * L

    if use_pallas is None:
        # Below ~1k rows the fixed pallas_call overhead dominates; let XLA fuse.
        use_pallas = M >= 1024

    if not use_pallas:
        out = jnp.einsum("bld,dn->bln", data.astype(w_prepared.dtype), w_prepared,
                         preferred_element_type=jnp.float32)
        return (out * non_pad_mask.astype(jnp.float32)).astype(out_dtype)

    x2d = data.reshape(M, D)                       # NOTE: no dtype cast here (saves an HBM pass)
    m2d = non_pad_mask.reshape(M, 1).astype(jnp.float32)

    x_itemsize = jnp.dtype(x2d.dtype).itemsize
    w_itemsize = jnp.dtype(w_prepared.dtype).itemsize
    TM, TN, TK = _choose_tiles(M, D, N, x_itemsize, w_itemsize)
    grid = (pl.cdiv(M, TM), pl.cdiv(N, TN), pl.cdiv(D, TK))

    cap = _vmem_capacity_bytes()
    cost = pl.CostEstimate(
        flops=2 * M * D * N,
        bytes_accessed=(M * D * x_itemsize + D * N * w_itemsize
                        + M * N * jnp.dtype(out_dtype).itemsize + M * 4),
        transcendentals=0)

    out2d = pl.pallas_call(
        _predictor_kernel,
        out_shape=jax.ShapeDtypeStruct((M, N), out_dtype),
        grid=grid,
        in_specs=[
            pl.BlockSpec((TM, TK), lambda i, j, k: (i, k)),   # stream x row tiles
            pl.BlockSpec((TK, TN), lambda i, j, k: (k, j)),   # weight tile (resident if 1 tile)
            pl.BlockSpec((TM, 1), lambda i, j, k: (i, 0)),    # stream mask row tiles
        ],
        out_specs=pl.BlockSpec((TM, TN), lambda i, j, k: (i, j)),
        scratch_shapes=[pltpu.VMEM((TM, TN), jnp.float32)],
        compiler_params=pltpu.CompilerParams(
            # M and N tiles are independent -> shard across TensorCores on v7x;
            # K is the reduction axis (accumulator), kept last and arbitrary.
            dimension_semantics=("parallel", "parallel", "arbitrary"),
            vmem_limit_bytes=int(min(cap // 2, 64 * 1024 * 1024)),
        ),
        cost_estimate=cost,
    )(x2d, w_prepared, m2d)

    return out2d.reshape(B, L, N)


def make_xavier_normal_weight(key, num_types, dim):
    # nn.init.xavier_normal_: std = sqrt(2 / (fan_in + fan_out))
    std = (2.0 / (dim + num_types)) ** 0.5
    return std * jax.random.normal(key, (num_types, dim), dtype=jnp.float32)


if __name__ == "__main__":
    # --- small deterministic shapes consistent with the module's forward ---
    B, L, D, NUM_TYPES = 2, 8, 32, 16

    key = jax.random.PRNGKey(0)
    k_data, k_w, k_mask, k2_data, k2_w, k2_mask = jax.random.split(key, 6)

    data = jax.random.normal(k_data, (B, L, D), dtype=jnp.float32)
    weight = make_xavier_normal_weight(k_w, NUM_TYPES, D)              # [num_types, D]
    non_pad_mask = (jax.random.uniform(k_mask, (B, L, 1)) > 0.25).astype(jnp.float32)

    ref = jnp.einsum("bld,nd->bln", data, weight,
                     precision=jax.lax.Precision.HIGHEST) * non_pad_mask

    # f32 compute path (matches the PyTorch module math).
    w_f32 = prepare_predictor_weight(weight, compute_dtype=jnp.float32)
    out_f32 = jax.block_until_ready(
        predictor_forward(data, w_f32, non_pad_mask, use_pallas=True))
    assert out_f32.shape == (B, L, NUM_TYPES)
    assert out_f32.dtype == jnp.float32
    assert jnp.allclose(out_f32, ref, atol=2e-2, rtol=2e-2)

    # bf16 compute path (halves weight HBM read; f32 accumulation on the MXU).
    w_bf16 = prepare_predictor_weight(weight, compute_dtype=jnp.bfloat16)
    out_bf16 = jax.block_until_ready(
        predictor_forward(data, w_bf16, non_pad_mask, use_pallas=True))
    assert out_bf16.shape == (B, L, NUM_TYPES)
    assert jnp.allclose(out_bf16, ref, atol=5e-2, rtol=5e-2)

    # --- slightly larger case: multi-tile M grid with a partial last row tile ---
    B2, L2, D2, N2 = 2, 150, 96, 48
    data2 = jax.random.normal(k2_data, (B2, L2, D2), dtype=jnp.float32)
    weight2 = make_xavier_normal_weight(k2_w, N2, D2)
    mask2 = (jax.random.uniform(k2_mask, (B2, L2, 1)) > 0.25).astype(jnp.float32)

    ref2 = jnp.einsum("bld,nd->bln", data2, weight2,
                      precision=jax.lax.Precision.HIGHEST) * mask2
    w2 = prepare_predictor_weight(weight2, compute_dtype=jnp.float32)
    out2 = jax.block_until_ready(
        predictor_forward(data2, w2, mask2, use_pallas=True))
    assert out2.shape == (B2, L2, N2)
    assert jnp.allclose(out2, ref2, atol=2e-2, rtol=2e-2)

    print("KERNEL_OK")
</pallas_src>

<mosaic_0001>
module attributes {stable_mosaic.version = 11 : i64} {
  func.func @_predictor_kernel(%arg0: i32, %arg1: i32, %arg2: i32, %arg3: memref<16x32xf32, #tpu.memory_space<vmem>>, %arg4: memref<32x16xf32, #tpu.memory_space<vmem>>, %arg5: memref<16x1xf32, #tpu.memory_space<vmem>>, %arg6: memref<16x16xf32, #tpu.memory_space<vmem>>, %arg7: memref<16x16xf32, #tpu.memory_space<vmem>>) attributes {dimension_semantics = [#tpu.dimension_semantics<parallel>, #tpu.dimension_semantics<parallel>, #tpu.dimension_semantics<arbitrary>], iteration_bounds = array<i64: 1, 1, 1>, scalar_prefetch = 0 : i64, scratch_operands = 1 : i64, tpu.core_type = #tpu.core_type<tc>, window_params = [{transform_indices = @transform_0, window_bounds = array<i64: 16, 32>}, {transform_indices = @transform_1, window_bounds = array<i64: 32, 16>}, {transform_indices = @transform_2, window_bounds = array<i64: 16, 1>}, {transform_indices = @transform_3, window_bounds = array<i64: 16, 16>}]} {
    %c0_i32 = arith.constant 0 : i32
    %0 = arith.cmpi eq, %arg2, %c0_i32 : i32
    %1 = arith.extui %0 : i1 to i32
    %c0_i32_0 = arith.constant 0 : i32
    %2 = arith.cmpi ne, %1, %c0_i32_0 : i32
    scf.if %2 {
      %cst_10 = arith.constant 0.000000e+00 : f32
      %12 = vector.broadcast %cst_10 : f32 to vector<16x16xf32>
      %c0_11 = arith.constant 0 : index
      %c0_12 = arith.constant 0 : index
      %13 = vector.load %arg7[%c0_11, %c0_12] : memref<16x16xf32, #tpu.memory_space<vmem>>, vector<16x16xf32>
      tpu.vector_store %arg7[%c0_11, %c0_12], %12 {strides = array<i32>} : memref<16x16xf32, #tpu.memory_space<vmem>>, vector<16x16xf32>,
    } else {
    }
    %c0 = arith.constant 0 : index
    %c0_1 = arith.constant 0 : index
    %3 = vector.load %arg7[%c0, %c0_1] : memref<16x16xf32, #tpu.memory_space<vmem>>, vector<16x16xf32>
    %c0_2 = arith.constant 0 : index
    %c0_3 = arith.constant 0 : index
    %4 = vector.load %arg3[%c0_2, %c0_3] : memref<16x32xf32, #tpu.memory_space<vmem>>, vector<16x32xf32>
    %c0_4 = arith.constant 0 : index
    %c0_5 = arith.constant 0 : index
    %5 = vector.load %arg4[%c0_4, %c0_5] : memref<32x16xf32, #tpu.memory_space<vmem>>, vector<32x16xf32>
    %cst = arith.constant dense<0.000000e+00> : vector<16x16xf32>
    %6 = tpu.matmul %4, %5, %cst {dimension_numbers = #tpu.dot_dimension_numbers<[1], [0], [0], [1], [0, 0, 1, 1], [], []>} : vector<16x32xf32>, vector<32x16xf32>, vector<16x16xf32> -> vector<16x16xf32>
    %7 = arith.addf %3, %6 : vector<16x16xf32>
    %c0_6 = arith.constant 0 : index
    %c0_7 = arith.constant 0 : index
    %8 = vector.load %arg7[%c0_6, %c0_7] : memref<16x16xf32, #tpu.memory_space<vmem>>, vector<16x16xf32>
    tpu.vector_store %arg7[%c0_6, %c0_7], %7 {strides = array<i32>} : memref<16x16xf32, #tpu.memory_space<vmem>>, vector<16x16xf32>,
    %c0_i32_8 = arith.constant 0 : i32
    %9 = arith.cmpi eq, %arg2, %c0_i32_8 : i32
    %10 = arith.extui %9 : i1 to i32
    %c0_i32_9 = arith.constant 0 : i32
    %11 = arith.cmpi ne, %10, %c0_i32_9 : i32
    scf.if %11 {
      %c0_10 = arith.constant 0 : index
      %c0_11 = arith.constant 0 : index
      %12 = vector.load %arg7[%c0_10, %c0_11] : memref<16x16xf32, #tpu.memory_space<vmem>>, vector<16x16xf32>
      %c0_12 = arith.constant 0 : index
      %c0_13 = arith.constant 0 : index
      %13 = vector.load %arg5[%c0_12, %c0_13] : memref<16x1xf32, #tpu.memory_space<vmem>>, vector<16x1xf32>
      %14 = vector.broadcast %13 : vector<16x1xf32> to vector<16x16xf32>
      %15 = arith.mulf %12, %14 : vector<16x16xf32>
      %c0_14 = arith.constant 0 : index
      %c0_15 = arith.constant 0 : index
      %16 = vector.load %arg6[%c0_14, %c0_15] : memref<16x16xf32, #tpu.memory_space<vmem>>, vector<16x16xf32>
      tpu.vector_store %arg6[%c0_14, %c0_15], %15 {strides = array<i32>} : memref<16x16xf32, #tpu.memory_space<vmem>>, vector<16x16xf32>,
    } else {
    }
    return
  }
  func.func @transform_0(%arg0: i32, %arg1: i32, %arg2: i32) -> (i32, i32) {
    %c0_i32 = arith.constant 0 : i32
    return %arg0, %arg2 : i32, i32
  }
  func.func @transform_1(%arg0: i32, %arg1: i32, %arg2: i32) -> (i32, i32) {
    %c0_i32 = arith.constant 0 : i32
    return %arg2, %arg1 : i32, i32
  }
  func.func @transform_2(%arg0: i32, %arg1: i32, %arg2: i32) -> (i32, i32) {
    %c0_i32 = arith.constant 0 : i32
    %c0_i32_0 = arith.constant 0 : i32
    return %arg0, %c0_i32 : i32, i32
  }
  func.func @transform_3(%arg0: i32, %arg1: i32, %arg2: i32) -> (i32, i32) {
    %c0_i32 = arith.constant 0 : i32
    return %arg0, %arg1 : i32, i32
  }
}

</mosaic_0001>

<llo_original>
// kernel: tpu_custom_call.1
$region0: #{tpu_custom_call.1}
  #allocation0 [shape = 'u32[]', space=smem, size = 0x4, offset = 0x4, fixed_abs, tag = 'smem constant byte address 0x4 - core index']
  #allocation1 [shape = 'u32[144,128]{1,0:T(1,128)}', space=vmem, size = 0x12000, scoped, tag = 'internal scratch']
  #allocation2 [shape = 'f32[16,16]{1,0:T(8,128)}', space=vmem, size = 0x2000, scoped, tag = 'scratch operand']
  %s0 = inlined_call_operand.vmem [shape: f32[16,32], index: 0, kind: input, shape index: {}]
  %s1 = inlined_call_operand.vmem [shape: f32[32,16], index: 1, kind: input, shape index: {}]
  %s2 = inlined_call_operand.vmem [shape: f32[16,1], index: 2, kind: input, shape index: {}]
  %s3 = inlined_call_operand.hbm [shape: f32[16,16], index: 3, kind: output, shape index: {}]
  %s4 = sld [smem:[#allocation0]]
  $region30: #{tpu_custom_call.1} parent=0
    _
  %s6 = ssub.s32 1, %s4
  %s7 = scalar_select 0, %s6, %s4
  $region1: #{tpu_custom_call.1} parent=0
    #allocation3 [shape = 'u8[8192]{0}', space=vmem, size = 0x2000, scoped, tag = 'output window, operand 0, single buffered']
    #allocation4 [shape = 's32[1]{0}', space=sflag, size = 0x4, scoped, tag = 'scoped memory for tpu_custom_call.1']
    %8 = vsyncpa [#allocation4], 0
    // Predicated region
    $region2: #{tpu_custom_call.1} parent=1 // pred_check
      _
    $region3: #{tpu_custom_call.1} parent=1 // pred_check_branch
      %10 = sbr.rel (0) target = $region5
    $region4: #{tpu_custom_call.1} parent=1 // pred_region
      _
    $region5: #{tpu_custom_call.1} parent=1 // pred_fallthru
      _
    // Predicated region
    $region6: #{tpu_custom_call.1} parent=1 // pred_check
      _
    $region7: #{tpu_custom_call.1} parent=1 // pred_check_branch
      %12 = sbr.rel (0) target = $region9
    $region8: #{tpu_custom_call.1} parent=1 // pred_region
      _
    $region9: #{tpu_custom_call.1} parent=1 // pred_fallthru
      _
    // Predicated region
    $region10: #{tpu_custom_call.1} parent=1 // pred_check
      _
    $region11: #{tpu_custom_call.1} parent=1 // pred_check_branch
      %14 = sbr.rel (0) target = $region13
    $region12: #{tpu_custom_call.1} parent=1 // pred_region
      _
    $region13: #{tpu_custom_call.1} parent=1 // pred_fallthru
      _
    %p15 = scmp.eq.s32.totalorder 0, 0
    // Predicated region
    $region14: #{tpu_custom_call.1} parent=1 // pred_check
      %p16 = pneg %p15
    $region15: #{tpu_custom_call.1} parent=1 // pred_check_branch
      %18 = sbr.rel (%p16) target = $region17
    $region16: #{tpu_custom_call.1} parent=1 // pred_region
      %vm19 = vcmask 130048
      %20 = vst.msk [vmem:[#allocation2] sm:$0xff] %vm19, 0.0
      %21 = vst.msk [vmem:[#allocation2 + $0x8] sm:$0xff] %vm19, 0.0
    $region17: #{tpu_custom_call.1} parent=1 // pred_fallthru
      _
    %v22 = vld [vmem:[#allocation2] sm:$0xff]
    %v23 = vld [vmem:[#allocation2 + $0x8] sm:$0xff]
    %v24 = vld [vmem:[%s0] sm:$0xff]
    %v25 = vld [vmem:[%s0 + $0x8] sm:$0xff]
    %v26 = vld [vmem:[%s1] sm:$0xff]
    %v27 = vld [vmem:[%s1 + $0x8] sm:$0xff]
    %v28 = vld [vmem:[%s1 + $0x10] sm:$0xff]
    %v29 = vld [vmem:[%s1 + $0x18] sm:$0xff]
    %vm30 = vcmask 261120
    %v32 = vsel %vm30, %v24, 0
    %v35 = vsel %vm30, %v25, 0
    %37 = vmatprep.subr.mxu0 0.0
    %38 = vmatpush1.msra.mxu0 0.0
    %39 = vmatprep.subr.mxu0 0.0
    %40 = vmatpush1.msra.mxu0 0.0
    %41 = vmatprep.subr.mxu0 0.0
    %42 = vmatpush1.msra.mxu0 0.0
    %43 = vmatprep.subr.mxu0 0.0
    %44 = vmatpush1.msra.mxu0 0.0
    %45 = vmatprep.subr.mxu0 0.0
    %46 = vmatpush1.msra.mxu0 0.0
    %47 = vmatprep.subr.mxu0 0.0
    %48 = vmatpush1.msra.mxu0 0.0
    %49 = vmatprep.subr.mxu0 0.0
    %50 = vmatpush1.msra.mxu0 0.0
    %51 = vmatprep.subr.mxu0 0.0
    %52 = vmatpush1.msra.mxu0 0.0
    %53 = vmatprep.subr.mxu0 0.0
    %54 = vmatpush1.msra.mxu0 0.0
    %55 = vmatprep.subr.mxu0 0.0
    %56 = vmatpush1.msra.mxu0 0.0
    %57 = vmatprep.subr.mxu0 0.0
    %58 = vmatpush1.msra.mxu0 0.0
    %59 = vmatprep.subr.mxu0 0.0
    %60 = vmatpush1.msra.mxu0 0.0
    %61 = vmatprep.subr.mxu0 0.0
    %62 = vmatpush1.msra.mxu0 %v29
    %63 = vmatprep.subr.mxu0 0.0
    %64 = vmatpush1.msra.mxu0 %v28
    %65 = vmatprep.subr.mxu0 0.0
    %66 = vmatpush1.msra.mxu0 %v27
    %67 = vmatprep.subr.mxu0 0.0
    %68 = vmatpush1.msra.mxu0 %v26
    %69 = vmatprep.subr.mxu0 0.0
    %70 = vmatpush2.msra.mxu0 0.0
    %71 = vmatprep.subr.mxu0 0.0
    %72 = vmatpush2.msra.mxu0 0.0
    %73 = vmatprep.subr.mxu0 0.0
    %74 = vmatpush2.msra.mxu0 0.0
    %75 = vmatprep.subr.mxu0 0.0
    %76 = vmatpush2.msra.mxu0 0.0
    %77 = vmatprep.subr.mxu0 0.0
    %78 = vmatpush2.msra.mxu0 0.0
    %79 = vmatprep.subr.mxu0 0.0
    %80 = vmatpush2.msra.mxu0 0.0
    %81 = vmatprep.subr.mxu0 0.0
    %82 = vmatpush2.msra.mxu0 0.0
    %83 = vmatprep.subr.mxu0 0.0
    %84 = vmatpush2.msra.mxu0 0.0
    %85 = vmatprep.subr.mxu0 0.0
    %86 = vmatpush2.msra.mxu0 0.0
    %87 = vmatprep.subr.mxu0 0.0
    %88 = vmatpush2.msra.mxu0 0.0
    %89 = vmatprep.subr.mxu0 0.0
    %90 = vmatpush2.msra.mxu0 0.0
    %91 = vmatprep.subr.mxu0 0.0
    %92 = vmatpush2.msra.mxu0 0.0
    %93 = vmatprep.subr.mxu0 0.0
    %94 = vmatpush2.msra.mxu0 0.0
    %95 = vmatprep.subr.mxu0 0.0
    %96 = vmatpush2.msra.mxu0 0.0
    %97 = vmatprep.subr.mxu0 0.0
    %98 = vmatpush2.msra.mxu0 0.0
    %99 = vmatprep.subr.mxu0 0.0
    %100 = vmatpush2.msra.mxu0 0.0
    %101 = vmatprep.mubr.f32.mxu0 0.0
    %102 = vmatmul.mubr.f32.gmra.mxu0 %v32
    %v103 = vpop.f32.mrf.mxu0
    %v104 = vadd.f32 0.0, %v103
    %v105 = vpop.f32.mrf.mxu0
    %106 = vmatprep.mubr.f32.mxu0 0.0
    %107 = vmatmul.mubr.f32.gmra.mxu0 %v35
    %v108 = vpop.f32.mrf.mxu0
    %v109 = vadd.f32 0.0, %v108
    %v110 = vpop.f32.mrf.mxu0
    %111 = vdwg.mxu0
    %v112 = vadd.f32 %v22, %v104
    %v113 = vadd.f32 %v23, %v109
    %vm114 = vcmask 130048
    %115 = vst.msk [vmem:[#allocation2] sm:$0xff] %vm114, %v112
    %116 = vst.msk [vmem:[#allocation2 + $0x8] sm:$0xff] %vm114, %v113
    // Predicated region
    $region18: #{tpu_custom_call.1} parent=1 // pred_check
      %p117 = pneg %p15
    $region19: #{tpu_custom_call.1} parent=1 // pred_check_branch
      %119 = sbr.rel (%p117) target = $region21
    $region20: #{tpu_custom_call.1} parent=1 // pred_region
      %v120 = vld [vmem:[#allocation2] sm:$0xff]
      %v121 = vld [vmem:[#allocation2 + $0x8] sm:$0xff]
      %v122 = vld [vmem:[%s2] sm:$0xff]
      %v123 = vld [vmem:[%s2 + $0x8] sm:$0xff]
      %125 = vset.pattern.permute.xlu0 0
      %126 = vperm.xlu0 %125, %v122
      %v127 = vpop.permute.xlu0 %126
      %130 = vset.pattern.permute.xlu0 0
      %131 = vperm.xlu0 %130, %v123
      %v132 = vpop.permute.xlu0 %131
      %v134 = vmul.f32 %v120, %v127
      %v135 = vmul.f32 %v121, %v132
      %136 = vst.msk [vmem:[#allocation3] sm:$0xff] %vm114, %v134
      %137 = vst.msk [vmem:[#allocation3 + $0x8] sm:$0xff] %vm114, %v135
    $region21: #{tpu_custom_call.1} parent=1 // pred_fallthru
      _
    // Predicated region
    $region22: #{tpu_custom_call.1} parent=1 // pred_check
      _
    $region23: #{tpu_custom_call.1} parent=1 // pred_check_branch
      %139 = sbr.rel (0) target = $region25
    $region24: #{tpu_custom_call.1} parent=1 // pred_region
      %s141 = ssub.s32 256, 256
      %142 = vsyncadd [#allocation4], %s141
      %s143 = sshll.u32 [#allocation3], 4
      %s144 = int_to_ptr.vmem [resolvable:$true] %s143
      %149 = dma.vmem_to_hbm [thread:$0]  %s144, 256, %s3, [#allocation4], 128, 128, 8
    $region25: #{tpu_custom_call.1} parent=1 // pred_fallthru
      _
    // Predicated region
    $region26: #{tpu_custom_call.1} parent=1 // pred_check
      _
    $region27: #{tpu_custom_call.1} parent=1 // pred_check_branch
      %151 = sbr.rel (0) target = $region29
    $region28: #{tpu_custom_call.1} parent=1 // pred_region
      %152 = dma.done [#allocation4], 256
    $region29: #{tpu_custom_call.1} parent=1 // pred_fallthru
      _
    %153 = vsyncpa [#allocation4], 1

</llo_original>
